<compile_context>
chip_gen: v7x
topology: tpu7x:2x2x1
jax: 0.10.0
libtpu: 0.0.40
codegen_flags: <defaults>
</compile_context>

<pallas_src>
import functools

import jax
import jax.numpy as jnp
import numpy as np
from jax.experimental import pallas as pl
from jax.experimental.pallas import tpu as pltpu

_LANE = 128
_VMEM_BUDGET = 40 * 1024 * 1024   # working-set target (fits v7x 64 MiB VMEM)
_VMEM_LIMIT = 48 * 1024 * 1024    # scoped VMEM limit handed to the compiler
_MAX_TM = 512                     # max row tile


def _round_up(a, m):
    return ((a + m - 1) // m) * m


def _cdiv(a, b):
    return -(-a // b)


# ---------------------------------------------------------------------------
# Kernels
# ---------------------------------------------------------------------------

def _block_body(x, w0, b0, w1, b1, x_s, final_nl):
    """net = fc0(relu(x)); dx = fc1(relu(net)); out = x_s + dx [; leaky_relu]."""
    h = jnp.maximum(x, 0)                                                # actvn(x), native dtype
    net = jnp.dot(h, w0, preferred_element_type=jnp.float32) + b0        # fc_0 (f32 accum)
    net = jnp.maximum(net, 0.0)                                          # actvn(net)
    dx = jnp.dot(net.astype(w1.dtype), w1,
                 preferred_element_type=jnp.float32) + b1                # fc_1 (f32 accum)
    out = x_s + dx
    if final_nl:
        out = jnp.where(out >= 0.0, out, 0.2 * out)                      # leaky_relu(0.2)
    return out


def _kernel_shortcut(x_ref, w0_ref, b0_ref, w1_ref, b1_ref, ws_ref, o_ref,
                     *, final_nl):
    x = x_ref[...]
    x_s = jnp.dot(x, ws_ref[...], preferred_element_type=jnp.float32)    # shortcut (no bias)
    out = _block_body(x, w0_ref[...], b0_ref[...].astype(jnp.float32),
                      w1_ref[...], b1_ref[...].astype(jnp.float32),
                      x_s, final_nl)
    o_ref[...] = out.astype(o_ref.dtype)


def _kernel_identity(x_ref, w0_ref, b0_ref, w1_ref, b1_ref, o_ref, *, final_nl):
    x = x_ref[...]
    out = _block_body(x, w0_ref[...], b0_ref[...].astype(jnp.float32),
                      w1_ref[...], b1_ref[...].astype(jnp.float32),
                      x.astype(jnp.float32), final_nl)
    o_ref[...] = out.astype(o_ref.dtype)


# ---------------------------------------------------------------------------
# Wrapper
# ---------------------------------------------------------------------------

def _choose_tm(n, in_p, h_p, out_p, itemsize, has_shortcut):
    """Largest row tile that fits the VMEM budget, rebalanced to cut padding."""
    row_align = 8 if itemsize >= 4 else 32 // itemsize        # 8 f32 / 16 bf16
    weight_elems = in_p * h_p + h_p * out_p + h_p + out_p
    if has_shortcut:
        weight_elems += in_p * out_p
    weight_bytes = weight_elems * itemsize
    # per-row bytes: double-buffered x & out tiles + f32 intermediates
    per_row = 2 * (in_p + out_p) * itemsize + (in_p + h_p + 2 * out_p) * 4
    avail = max(_VMEM_BUDGET - weight_bytes, per_row * row_align)
    tm = (avail // per_row) // row_align * row_align
    tm = int(max(row_align, min(_MAX_TM, tm)))

    n_aligned = _round_up(n, row_align)
    # Rebalance: keep the same tile count (>= 2 tiles when there is enough
    # work, so both v7x TensorCores get a tile) but shrink tm so the last
    # tile is not mostly padding.
    num_tiles = max(_cdiv(n_aligned, tm),
                    2 if n_aligned >= 2 * row_align else 1)
    tm = _round_up(_cdiv(n_aligned, num_tiles), row_align)
    return int(max(row_align, min(_MAX_TM, tm)))


def _maybe_pad(a, pads):
    if all(p == (0, 0) for p in pads):
        return a
    return jnp.pad(a, pads)


def resnet_block_fc(x, params, final_nl=False):
    """Pallas implementation of ResnetBlockFC.forward.

    params: dict with
      w0: (size_in, size_h), b0: (size_h,)     -- fc_0 (weight pre-transposed)
      w1: (size_h, size_out), b1: (size_out,)  -- fc_1 (weight pre-transposed)
      ws: (size_in, size_out) or None          -- shortcut (only if size_in != size_out)
    """
    w0, b0, w1, b1 = params["w0"], params["b0"], params["w1"], params["b1"]
    ws = params.get("ws", None)
    size_in, size_h = w0.shape
    size_out = w1.shape[1]

    lead = x.shape[:-1]
    n = int(np.prod(lead)) if lead else 1
    x2 = x.reshape(n, size_in)

    # Lane-dense feature padding (exact: zero cols x zero rows contribute 0).
    in_p = _round_up(size_in, _LANE)
    h_p = _round_up(size_h, _LANE)
    out_p = _round_up(size_out, _LANE)

    itemsize = jnp.dtype(w0.dtype).itemsize
    tm = _choose_tm(n, in_p, h_p, out_p, itemsize, ws is not None)
    n_p = _round_up(n, tm)

    x2 = _maybe_pad(x2, ((0, n_p - n), (0, in_p - size_in)))
    w0_p = _maybe_pad(w0, ((0, in_p - size_in), (0, h_p - size_h)))
    b0_p = _maybe_pad(b0, ((0, h_p - size_h),)).reshape(1, h_p)
    w1_p = _maybe_pad(w1, ((0, h_p - size_h), (0, out_p - size_out)))
    b1_p = _maybe_pad(b1, ((0, out_p - size_out),)).reshape(1, out_p)

    const = lambda i: (0, 0)
    in_specs = [
        pl.BlockSpec((tm, in_p), lambda i: (i, 0)),
        pl.BlockSpec((in_p, h_p), const, pipeline_mode=pl.Buffered(1)),
        pl.BlockSpec((1, h_p), const, pipeline_mode=pl.Buffered(1)),
        pl.BlockSpec((h_p, out_p), const, pipeline_mode=pl.Buffered(1)),
        pl.BlockSpec((1, out_p), const, pipeline_mode=pl.Buffered(1)),
    ]
    args = [x2, w0_p, b0_p, w1_p, b1_p]

    if ws is not None:
        ws_p = _maybe_pad(ws, ((0, in_p - size_in), (0, out_p - size_out)))
        in_specs.append(
            pl.BlockSpec((in_p, out_p), const, pipeline_mode=pl.Buffered(1)))
        args.append(ws_p)
        kernel = functools.partial(_kernel_shortcut, final_nl=final_nl)
    else:
        kernel = functools.partial(_kernel_identity, final_nl=final_nl)

    # Advisory cost estimate for the XLA scheduler.
    flops = 2 * n * (size_in * size_h + size_h * size_out)
    if ws is not None:
        flops += 2 * n * size_in * size_out
    weight_bytes = (in_p * h_p + h_p * out_p + h_p + out_p
                    + (in_p * out_p if ws is not None else 0)) * itemsize
    io_bytes = (n_p * in_p + n_p * out_p) * jnp.dtype(x.dtype).itemsize
    cost = pl.CostEstimate(flops=int(flops), transcendentals=0,
                           bytes_accessed=int(weight_bytes + io_bytes))

    out2 = pl.pallas_call(
        kernel,
        out_shape=jax.ShapeDtypeStruct((n_p, out_p), x.dtype),
        grid_spec=pl.GridSpec(
            grid=(n_p // tm,),
            in_specs=in_specs,
            out_specs=pl.BlockSpec((tm, out_p), lambda i: (i, 0)),
        ),
        compiler_params=pltpu.CompilerParams(
            dimension_semantics=("parallel",),
            vmem_limit_bytes=_VMEM_LIMIT,
        ),
        cost_estimate=cost,
    )(*args)

    out2 = out2[:n, :size_out]
    return out2.reshape(*lead, size_out)


# ---------------------------------------------------------------------------
# Params + reference
# ---------------------------------------------------------------------------

def make_params(key, size_in, size_out=None, size_h=None, dtype=jnp.float32):
    """Deterministic synthetic params matching ResnetBlockFC.__init__ shapes."""
    if size_out is None:
        size_out = size_in
    if size_h is None:
        size_h = min(size_in, size_out)
    k0, k1, k2, k3 = jax.random.split(key, 4)
    params = {
        # fc_0: weight (size_h, size_in) -> stored transposed (size_in, size_h)
        "w0": (0.05 * jax.random.normal(k0, (size_in, size_h))).astype(dtype),
        "b0": (0.05 * jax.random.normal(k1, (size_h,))).astype(dtype),
        # fc_1: nn.init.zeros_(self.fc_1.weight)
        "w1": jnp.zeros((size_h, size_out), dtype=dtype),
        "b1": (0.05 * jax.random.normal(k2, (size_out,))).astype(dtype),
    }
    if size_in != size_out:
        # shortcut: Linear(size_in, size_out, bias=False) -> transposed
        params["ws"] = (0.05 * jax.random.normal(k3, (size_in, size_out))).astype(dtype)
    else:
        params["ws"] = None
    return params


def _reference(x, params, final_nl=False):
    """Pure-JAX reference mirroring the PyTorch forward."""
    net = jnp.maximum(x, 0.0) @ params["w0"] + params["b0"]
    dx = jnp.maximum(net, 0.0) @ params["w1"] + params["b1"]
    x_s = x @ params["ws"] if params.get("ws", None) is not None else x
    out = x_s + dx
    if final_nl:
        out = jnp.where(out >= 0.0, out, 0.2 * out)
    return out


if __name__ == "__main__":
    key = jax.random.PRNGKey(0)
    kx, kp = jax.random.split(key)

    size_in, size_out = 32, 64          # size_h defaults to min(32, 64) = 32
    batch, seq = 2, 8
    x = jax.random.normal(kx, (batch, seq, size_in), dtype=jnp.float32)

    # Shortcut path (size_in != size_out), with final leaky-ReLU.
    params = make_params(kp, size_in, size_out)
    out = jax.block_until_ready(resnet_block_fc(x, params, final_nl=True))
    ref = _reference(x, params, final_nl=True)
    np.testing.assert_allclose(np.asarray(out), np.asarray(ref),
                               rtol=1e-5, atol=1e-5)
    assert out.shape == (batch, seq, size_out)

    # Identity-shortcut path (size_in == size_out), no final nonlinearity.
    params_id = make_params(kp, size_in, size_in)
    out_id = jax.block_until_ready(resnet_block_fc(x, params_id, final_nl=False))
    ref_id = _reference(x, params_id, final_nl=False)
    np.testing.assert_allclose(np.asarray(out_id), np.asarray(ref_id),
                               rtol=1e-5, atol=1e-5)
    assert out_id.shape == (batch, seq, size_in)

    print("KERNEL_OK")
</pallas_src>

<mosaic_0001>
module attributes {stable_mosaic.version = 11 : i64} {
  func.func @_kernel_shortcut(%arg0: i32, %arg1: memref<8x128xf32, #tpu.memory_space<vmem>>, %arg2: memref<128x128xf32, #tpu.memory_space<vmem>>, %arg3: memref<1x128xf32, #tpu.memory_space<vmem>>, %arg4: memref<128x128xf32, #tpu.memory_space<vmem>>, %arg5: memref<1x128xf32, #tpu.memory_space<vmem>>, %arg6: memref<128x128xf32, #tpu.memory_space<vmem>>, %arg7: memref<8x128xf32, #tpu.memory_space<vmem>>) attributes {dimension_semantics = [#tpu.dimension_semantics<parallel>], iteration_bounds = array<i64: 2>, scalar_prefetch = 0 : i64, scratch_operands = 0 : i64, tpu.core_type = #tpu.core_type<tc>, window_params = [{transform_indices = @transform_0, window_bounds = array<i64: 8, 128>}, {pipeline_mode = #tpu.pipeline_mode<synchronous>, transform_indices = @transform_1, window_bounds = array<i64: 128, 128>}, {pipeline_mode = #tpu.pipeline_mode<synchronous>, transform_indices = @transform_2, window_bounds = array<i64: 1, 128>}, {pipeline_mode = #tpu.pipeline_mode<synchronous>, transform_indices = @transform_3, window_bounds = array<i64: 128, 128>}, {pipeline_mode = #tpu.pipeline_mode<synchronous>, transform_indices = @transform_4, window_bounds = array<i64: 1, 128>}, {pipeline_mode = #tpu.pipeline_mode<synchronous>, transform_indices = @transform_5, window_bounds = array<i64: 128, 128>}, {transform_indices = @transform_6, window_bounds = array<i64: 8, 128>}]} {
    %c0 = arith.constant 0 : index
    %c0_0 = arith.constant 0 : index
    %0 = vector.load %arg1[%c0, %c0_0] : memref<8x128xf32, #tpu.memory_space<vmem>>, vector<8x128xf32>
    %c0_1 = arith.constant 0 : index
    %c0_2 = arith.constant 0 : index
    %1 = vector.load %arg6[%c0_1, %c0_2] : memref<128x128xf32, #tpu.memory_space<vmem>>, vector<128x128xf32>
    %cst = arith.constant dense<0.000000e+00> : vector<8x128xf32>
    %2 = tpu.matmul %0, %1, %cst {dimension_numbers = #tpu.dot_dimension_numbers<[1], [0], [0], [1], [0, 0, 1, 1], [], []>} : vector<8x128xf32>, vector<128x128xf32>, vector<8x128xf32> -> vector<8x128xf32>
    %c0_3 = arith.constant 0 : index
    %c0_4 = arith.constant 0 : index
    %3 = vector.load %arg2[%c0_3, %c0_4] : memref<128x128xf32, #tpu.memory_space<vmem>>, vector<128x128xf32>
    %c0_5 = arith.constant 0 : index
    %c0_6 = arith.constant 0 : index
    %4 = vector.load %arg3[%c0_5, %c0_6] : memref<1x128xf32, #tpu.memory_space<vmem>>, vector<1x128xf32>
    %c0_7 = arith.constant 0 : index
    %c0_8 = arith.constant 0 : index
    %5 = vector.load %arg4[%c0_7, %c0_8] : memref<128x128xf32, #tpu.memory_space<vmem>>, vector<128x128xf32>
    %c0_9 = arith.constant 0 : index
    %c0_10 = arith.constant 0 : index
    %6 = vector.load %arg5[%c0_9, %c0_10] : memref<1x128xf32, #tpu.memory_space<vmem>>, vector<1x128xf32>
    %cst_11 = arith.constant 0.000000e+00 : f32
    %7 = vector.broadcast %cst_11 : f32 to vector<8x128xf32>
    %8 = arith.maximumf %0, %7 : vector<8x128xf32>
    %cst_12 = arith.constant dense<0.000000e+00> : vector<8x128xf32>
    %9 = tpu.matmul %8, %3, %cst_12 {dimension_numbers = #tpu.dot_dimension_numbers<[1], [0], [0], [1], [0, 0, 1, 1], [], []>} : vector<8x128xf32>, vector<128x128xf32>, vector<8x128xf32> -> vector<8x128xf32>
    %10 = vector.broadcast %4 : vector<1x128xf32> to vector<8x128xf32>
    %11 = arith.addf %9, %10 : vector<8x128xf32>
    %cst_13 = arith.constant 0.000000e+00 : f32
    %12 = vector.broadcast %cst_13 : f32 to vector<8x128xf32>
    %13 = arith.maximumf %11, %12 : vector<8x128xf32>
    %cst_14 = arith.constant dense<0.000000e+00> : vector<8x128xf32>
    %14 = tpu.matmul %13, %5, %cst_14 {dimension_numbers = #tpu.dot_dimension_numbers<[1], [0], [0], [1], [0, 0, 1, 1], [], []>} : vector<8x128xf32>, vector<128x128xf32>, vector<8x128xf32> -> vector<8x128xf32>
    %15 = vector.broadcast %6 : vector<1x128xf32> to vector<8x128xf32>
    %16 = arith.addf %14, %15 : vector<8x128xf32>
    %17 = arith.addf %2, %16 : vector<8x128xf32>
    %cst_15 = arith.constant 0.000000e+00 : f32
    %18 = vector.broadcast %cst_15 : f32 to vector<8x128xf32>
    %19 = arith.cmpf oge, %17, %18 : vector<8x128xf32>
    %cst_16 = arith.constant 2.000000e-01 : f32
    %20 = vector.broadcast %cst_16 : f32 to vector<8x128xf32>
    %21 = arith.mulf %20, %17 : vector<8x128xf32>
    %22 = arith.select %19, %17, %21 : vector<8x128xi1>, vector<8x128xf32>
    %c0_17 = arith.constant 0 : index
    %c0_18 = arith.constant 0 : index
    %23 = vector.load %arg7[%c0_17, %c0_18] : memref<8x128xf32, #tpu.memory_space<vmem>>, vector<8x128xf32>
    tpu.vector_store %arg7[%c0_17, %c0_18], %22 {strides = array<i32>} : memref<8x128xf32, #tpu.memory_space<vmem>>, vector<8x128xf32>,
    return
  }
  func.func @transform_0(%arg0: i32) -> (i32, i32) {
    %c0_i32 = arith.constant 0 : i32
    %c0_i32_0 = arith.constant 0 : i32
    return %arg0, %c0_i32 : i32, i32
  }
  func.func @transform_1(%arg0: i32) -> (i32, i32) {
    %c0_i32 = arith.constant 0 : i32
    %c0_i32_0 = arith.constant 0 : i32
    %c0_i32_1 = arith.constant 0 : i32
    return %c0_i32, %c0_i32_0 : i32, i32
  }
  func.func @transform_2(%arg0: i32) -> (i32, i32) {
    %c0_i32 = arith.constant 0 : i32
    %c0_i32_0 = arith.constant 0 : i32
    %c0_i32_1 = arith.constant 0 : i32
    return %c0_i32, %c0_i32_0 : i32, i32
  }
  func.func @transform_3(%arg0: i32) -> (i32, i32) {
    %c0_i32 = arith.constant 0 : i32
    %c0_i32_0 = arith.constant 0 : i32
    %c0_i32_1 = arith.constant 0 : i32
    return %c0_i32, %c0_i32_0 : i32, i32
  }
  func.func @transform_4(%arg0: i32) -> (i32, i32) {
    %c0_i32 = arith.constant 0 : i32
    %c0_i32_0 = arith.constant 0 : i32
    %c0_i32_1 = arith.constant 0 : i32
    return %c0_i32, %c0_i32_0 : i32, i32
  }
  func.func @transform_5(%arg0: i32) -> (i32, i32) {
    %c0_i32 = arith.constant 0 : i32
    %c0_i32_0 = arith.constant 0 : i32
    %c0_i32_1 = arith.constant 0 : i32
    return %c0_i32, %c0_i32_0 : i32, i32
  }
  func.func @transform_6(%arg0: i32) -> (i32, i32) {
    %c0_i32 = arith.constant 0 : i32
    %c0_i32_0 = arith.constant 0 : i32
    return %arg0, %c0_i32 : i32, i32
  }
}

</mosaic_0001>

<llo_original>
// kernel: tpu_custom_call.1
$region0: #{tpu_custom_call.1}
  #allocation0 [shape = 'u32[]', space=smem, size = 0x4, offset = 0x4, fixed_abs, tag = 'smem constant byte address 0x4 - core index']
  #allocation1 [shape = 'u32[144,128]{1,0:T(1,128)}', space=vmem, size = 0x12000, scoped, tag = 'internal scratch']
  %s0 = inlined_call_operand.hbm [shape: f32[16,128], index: 0, kind: input, shape index: {}]
  %s1 = inlined_call_operand.hbm [shape: f32[128,128], index: 1, kind: input, shape index: {}]
  %s2 = inlined_call_operand.vmem [shape: f32[1,128], index: 2, kind: input, shape index: {}]
  %s3 = inlined_call_operand.hbm [shape: f32[128,128], index: 3, kind: input, shape index: {}]
  %s4 = inlined_call_operand.vmem [shape: f32[1,128], index: 4, kind: input, shape index: {}]
  %s5 = inlined_call_operand.hbm [shape: f32[128,128], index: 5, kind: input, shape index: {}]
  %s6 = inlined_call_operand.hbm [shape: f32[16,128], index: 6, kind: output, shape index: {}]
  %s7 = sld [smem:[#allocation0]]
  $region73: #{tpu_custom_call.1} parent=0
    _
  %s9 = ssub.s32 1, %s7
  %s10 = scalar_select 0, %s9, %s7
  $region1: #{tpu_custom_call.1} parent=0
    #allocation2 [shape = 'u8[8192]{0}', space=vmem, size = 0x2000, scoped, tag = 'input window, operand 0']
    #allocation3 [shape = 's32[2]{0}', space=sflag, size = 0x8, scoped, tag = 'scoped memory for tpu_custom_call.1']
    #allocation4 [shape = 's32[2]{0}', space=sflag, size = 0x8, scoped, tag = 'scoped memory for tpu_custom_call.1']
    #allocation5 [shape = 'u8[65536]{0}', space=vmem, size = 0x10000, scoped, tag = 'input window, operand 1, single buffered']
    #allocation6 [shape = 's32[1]{0}', space=sflag, size = 0x4, scoped, tag = 'scoped memory for tpu_custom_call.1']
    #allocation7 [shape = 'u8[65536]{0}', space=vmem, size = 0x10000, scoped, tag = 'input window, operand 3, single buffered']
    #allocation8 [shape = 'u8[65536]{0}', space=vmem, size = 0x10000, scoped, tag = 'input window, operand 5, single buffered']
    #allocation9 [shape = 's32[1]{0}', space=sflag, size = 0x4, scoped, tag = 'scoped memory for tpu_custom_call.1']
    #allocation10 [shape = 'u8[8192]{0}', space=vmem, size = 0x2000, scoped, tag = 'output window, operand 0']
    %11 = vsyncpa [#allocation3], 0
    %s12 = scalar_lea.sflag [#allocation3], 1
    %13 = vsyncpa %s12, 0
    %14 = vsyncpa [#allocation6], 0
    %15 = vsyncpa [#allocation9], 0
    %16 = vsyncpa [#allocation4], 0
    %s17 = scalar_lea.sflag [#allocation4], 1
    %18 = vsyncpa %s17, 0
    loop: start=0, step=1, limit=4
    $region2: #{tpu_custom_call.1} parent=1 // loop_pre_header
      _
    $region3: #{tpu_custom_call.1} parent=1 // loop_header
      %s20 = sphi 0, %s24
      %p21 = scmp.ge.s32.totalorder %s20, 4
      %s30 = sphi 0, %s32
      %s33 = sphi 0, %s30
      %s34 = sphi 0, %s33
      %s50 = sphi 0, %s34
      %s54 = sphi 0, %s54
      %s56 = sphi 0, %s54
      %s57 = sphi 0, %s56
      %s71 = sphi 0, %s57
      %s75 = sphi 0, %s75
      %s77 = sphi 0, %s75
      %s78 = sphi 0, %s77
      %s92 = sphi 0, %s78
      %s96 = sphi 0, %s96
      %s98 = sphi 0, %s96
      %s99 = sphi 0, %s98
      %s113 = sphi 0, %s99
      %s117 = sphi 0, %s117
      %s119 = sphi 0, %s117
      %s120 = sphi 0, %s119
      %s134 = sphi 0, %s120
      %s138 = sphi 0, %s138
      %s140 = sphi 0, %s138
      %s141 = sphi 0, %s140
      %s155 = sphi 0, %s141
      %s161 = sphi 0, %s163
      %s164 = sphi 0, %s161
      %s165 = sphi 0, %s164
      %s181 = sphi 0, %s165
    $region4: #{tpu_custom_call.1} parent=1 // loop_header_branch
      %23 = sbr.rel (%p21) target = $region8
    $region5: #{tpu_custom_call.1} parent=1 // loop_body
      %s25 = ssub.s32 %s20, 1
      %s26 = ssub.s32 %s20, 2
      %s27 = sadd.s32 %s20, 1
      %s28 = ssub.s32 %s20, %s27
      %p29 = scmp.eq.s32.totalorder %s28, 0
      %s31 = sadd.s32 %s30, 1
      %s32 = scalar_select %p29, %s30, %s31
      %p35 = pneg %p29
      %p36 = scmp.eq.s32.totalorder %s20, 1
      %p37 = por %p35, %p36
      %p38 = scmp.ne.s32.totalorder %s30, %s33
      %p39 = scmp.eq.s32.totalorder %s20, 0
      %p40 = por %p38, %p39
      %p41 = scmp.ne.s32.totalorder %s30, %s33
      %p42 = scmp.eq.s32.totalorder %s25, 1
      %p43 = por %p41, %p42
      %p44 = scmp.ne.s32.totalorder %s33, %s34
      %p45 = scmp.eq.s32.totalorder %s25, 0
      %p46 = por %p44, %p45
      %p47 = scmp.ne.s32.totalorder %s33, %s34
      %p48 = scmp.eq.s32.totalorder %s26, 1
      %p49 = por %p47, %p48
      %p51 = scmp.ne.s32.totalorder %s34, %s50
      %p52 = scmp.eq.s32.totalorder %s26, 0
      %p53 = por %p51, %p52
      %s55 = sadd.s32 %s54, 1
      %p58 = scmp.eq.s32.totalorder %s20, 1
      %p59 = scmp.ne.s32.totalorder %s54, %s56
      %p60 = scmp.eq.s32.totalorder %s20, 0
      %p61 = por %p59, %p60
      %p62 = scmp.ne.s32.totalorder %s54, %s56
      %p63 = scmp.eq.s32.totalorder %s25, 1
      %p64 = por %p62, %p63
      %p65 = scmp.ne.s32.totalorder %s56, %s57
      %p66 = scmp.eq.s32.totalorder %s25, 0
      %p67 = por %p65, %p66
      %p68 = scmp.ne.s32.totalorder %s56, %s57
      %p69 = scmp.eq.s32.totalorder %s26, 1
      %p70 = por %p68, %p69
      %p72 = scmp.ne.s32.totalorder %s57, %s71
      %p73 = scmp.eq.s32.totalorder %s26, 0
      %p74 = por %p72, %p73
      %s76 = sadd.s32 %s75, 1
      %p79 = scmp.eq.s32.totalorder %s20, 1
      %p80 = scmp.ne.s32.totalorder %s75, %s77
      %p81 = scmp.eq.s32.totalorder %s20, 0
      %p82 = por %p80, %p81
      %p83 = scmp.ne.s32.totalorder %s75, %s77
      %p84 = scmp.eq.s32.totalorder %s25, 1
      %p85 = por %p83, %p84
      %p86 = scmp.ne.s32.totalorder %s77, %s78
      %p87 = scmp.eq.s32.totalorder %s25, 0
      %p88 = por %p86, %p87
      %p89 = scmp.ne.s32.totalorder %s77, %s78
      %p90 = scmp.eq.s32.totalorder %s26, 1
      %p91 = por %p89, %p90
      %p93 = scmp.ne.s32.totalorder %s78, %s92
      %p94 = scmp.eq.s32.totalorder %s26, 0
      %p95 = por %p93, %p94
      %s97 = sadd.s32 %s96, 1
      %p100 = scmp.eq.s32.totalorder %s20, 1
      %p101 = scmp.ne.s32.totalorder %s96, %s98
      %p102 = scmp.eq.s32.totalorder %s20, 0
      %p103 = por %p101, %p102
      %p104 = scmp.ne.s32.totalorder %s96, %s98
      %p105 = scmp.eq.s32.totalorder %s25, 1
      %p106 = por %p104, %p105
      %p107 = scmp.ne.s32.totalorder %s98, %s99
      %p108 = scmp.eq.s32.totalorder %s25, 0
      %p109 = por %p107, %p108
      %p110 = scmp.ne.s32.totalorder %s98, %s99
      %p111 = scmp.eq.s32.totalorder %s26, 1
      %p112 = por %p110, %p111
      %p114 = scmp.ne.s32.totalorder %s99, %s113
      %p115 = scmp.eq.s32.totalorder %s26, 0
      %p116 = por %p114, %p115
      %s118 = sadd.s32 %s117, 1
      %p121 = scmp.eq.s32.totalorder %s20, 1
      %p122 = scmp.ne.s32.totalorder %s117, %s119
      %p123 = scmp.eq.s32.totalorder %s20, 0
      %p124 = por %p122, %p123
      %p125 = scmp.ne.s32.totalorder %s117, %s119
      %p126 = scmp.eq.s32.totalorder %s25, 1
      %p127 = por %p125, %p126
      %p128 = scmp.ne.s32.totalorder %s119, %s120
      %p129 = scmp.eq.s32.totalorder %s25, 0
      %p130 = por %p128, %p129
      %p131 = scmp.ne.s32.totalorder %s119, %s120
      %p132 = scmp.eq.s32.totalorder %s26, 1
      %p133 = por %p131, %p132
      %p135 = scmp.ne.s32.totalorder %s120, %s134
      %p136 = scmp.eq.s32.totalorder %s26, 0
      %p137 = por %p135, %p136
      %s139 = sadd.s32 %s138, 1
      %p142 = scmp.eq.s32.totalorder %s20, 1
      %p143 = scmp.ne.s32.totalorder %s138, %s140
      %p144 = scmp.eq.s32.totalorder %s20, 0
      %p145 = por %p143, %p144
      %p146 = scmp.ne.s32.totalorder %s138, %s140
      %p147 = scmp.eq.s32.totalorder %s25, 1
      %p148 = por %p146, %p147
      %p149 = scmp.ne.s32.totalorder %s140, %s141
      %p150 = scmp.eq.s32.totalorder %s25, 0
      %p151 = por %p149, %p150
      %p152 = scmp.ne.s32.totalorder %s140, %s141
      %p153 = scmp.eq.s32.totalorder %s26, 1
      %p154 = por %p152, %p153
      %p156 = scmp.ne.s32.totalorder %s141, %s155
      %p157 = scmp.eq.s32.totalorder %s26, 0
      %p158 = por %p156, %p157
      %s159 = ssub.s32 %s20, %s27
      %p160 = scmp.eq.s32.totalorder %s159, 0
      %s162 = sadd.s32 %s161, 1
      %s163 = scalar_select %p160, %s161, %s162
      %p166 = pneg %p160
      %p167 = scmp.eq.s32.totalorder %s20, 1
      %p168 = por %p166, %p167
      %p169 = scmp.ne.s32.totalorder %s161, %s164
      %p170 = scmp.eq.s32.totalorder %s20, 0
      %p171 = por %p169, %p170
      %p172 = scmp.ne.s32.totalorder %s161, %s164
      %p173 = scmp.eq.s32.totalorder %s25, 1
      %p174 = por %p172, %p173
      %p175 = scmp.ne.s32.totalorder %s164, %s165
      %p176 = scmp.eq.s32.totalorder %s25, 0
      %p177 = por %p175, %p176
      %p178 = scmp.ne.s32.totalorder %s164, %s165
      %p179 = scmp.eq.s32.totalorder %s26, 1
      %p180 = por %p178, %p179
      %p182 = scmp.ne.s32.totalorder %s165, %s181
      %p183 = scmp.eq.s32.totalorder %s26, 0
      %p184 = por %p182, %p183
      %p185 = scmp.le.s32.totalorder 1, %s20
      %p186 = scmp.lt.s32.totalorder %s20, 3
      %p187 = pnand %p185, %p186
      %p188 = pneg %p187
      // Predicated region
      $region9: #{tpu_custom_call.1} parent=5 // pred_check
        _
      $region10: #{tpu_custom_call.1} parent=5 // pred_check_branch
        %190 = sbr.rel (%p187) target = $region12
      $region11: #{tpu_custom_call.1} parent=5 // pred_region
        %s191 = ssub.s32 %s20, 1
        // Predicated region
        $region13: #{tpu_custom_call.1} parent=11 // pred_check
          %p192 = pneg %p67
        $region14: #{tpu_custom_call.1} parent=11 // pred_check_branch
          %194 = sbr.rel (%p192) target = $region16
        $region15: #{tpu_custom_call.1} parent=11 // pred_region
          %s196 = ssub.s32 2048, 2048
          %197 = vsyncadd [#allocation6], %s196
          %s198 = sshll.u32 [#allocation5], 4
          %s199 = int_to_ptr.vmem [resolvable:$true] %s198
          %204 = dma.hbm_to_vmem [thread:$0]  %s1, 2048, %s199, [#allocation6], 128, 128, 8
        $region16: #{tpu_custom_call.1} parent=11 // pred_fallthru
          _
        // Predicated region
        $region17: #{tpu_custom_call.1} parent=11 // pred_check
          %p205 = pneg %p88
        $region18: #{tpu_custom_call.1} parent=11 // pred_check_branch
          %207 = sbr.rel (%p205) target = $region20
        $region19: #{tpu_custom_call.1} parent=11 // pred_region
          _
        $region20: #{tpu_custom_call.1} parent=11 // pred_fallthru
          _
        // Predicated region
        $region21: #{tpu_custom_call.1} parent=11 // pred_check
          %p208 = pneg %p109
        $region22: #{tpu_custom_call.1} parent=11 // pred_check_branch
          %210 = sbr.rel (%p208) target = $region24
        $region23: #{tpu_custom_call.1} parent=11 // pred_region
          %s212 = ssub.s32 2048, 2048
          %213 = vsyncadd [#allocation6], %s212
          %s214 = sshll.u32 [#allocation7], 4
          %s215 = int_to_ptr.vmem [resolvable:$true] %s214
          %220 = dma.hbm_to_vmem [thread:$0]  %s3, 2048, %s215, [#allocation6], 128, 128, 8
        $region24: #{tpu_custom_call.1} parent=11 // pred_fallthru
          _
        // Predicated region
        $region25: #{tpu_custom_call.1} parent=11 // pred_check
          %p221 = pneg %p130
        $region26: #{tpu_custom_call.1} parent=11 // pred_check_branch
          %223 = sbr.rel (%p221) target = $region28
        $region27: #{tpu_custom_call.1} parent=11 // pred_region
          _
        $region28: #{tpu_custom_call.1} parent=11 // pred_fallthru
          _
        // Predicated region
        $region29: #{tpu_custom_call.1} parent=11 // pred_check
          %p224 = pneg %p151
        $region30: #{tpu_custom_call.1} parent=11 // pred_check_branch
          %226 = sbr.rel (%p224) target = $region32
        $region31: #{tpu_custom_call.1} parent=11 // pred_region
          %s228 = ssub.s32 2048, 2048
          %229 = vsyncadd [#allocation9], %s228
          %s230 = sshll.u32 [#allocation8], 4
          %s231 = int_to_ptr.vmem [resolvable:$true] %s230
          %236 = dma.hbm_to_vmem [thread:$0]  %s5, 2048, %s231, [#allocation9], 128, 128, 8
        $region32: #{tpu_custom_call.1} parent=11 // pred_fallthru
          _
      $region12: #{tpu_custom_call.1} parent=5 // pred_fallthru
        _
      %p237 = scmp.lt.s32.totalorder %s20, 2
      // Predicated region
      $region33: #{tpu_custom_call.1} parent=5 // pred_check
        %p238 = pneg %p237
      $region34: #{tpu_custom_call.1} parent=5 // pred_check_branch
        %240 = sbr.rel (%p238) target = $region36
      $region35: #{tpu_custom_call.1} parent=5 // pred_region
        // Predicated region
        $region37: #{tpu_custom_call.1} parent=35 // pred_check
          %p241 = pneg %p40
        $region38: #{tpu_custom_call.1} parent=35 // pred_check_branch
          %243 = sbr.rel (%p241) target = $region40
        $region39: #{tpu_custom_call.1} parent=35 // pred_region
          %s244 = sand.u32 %s30, 1
          %s245 = scalar_lea.sflag [#allocation3], %s244
          %s246 = sand.u32 %s30, 1
          %s247 = smul.addr %s246, 8
          %s248 = scalar_lea.vmem [#allocation2], %s247
          %s250 = ssub.s32 128, 128
          %251 = vsyncadd %s245, %s250
          %s252 = smul.addr %s20, 128
          %s253 = scalar_lea.hbm %s0, %s252
          %s255 = sshll.u32 %s248, 4
          %s256 = int_to_ptr.vmem [resolvable:$true] %s255
          %258 = dma.hbm_to_vmem [thread:$0]  %s253, 128, %s256, %s245
        $region40: #{tpu_custom_call.1} parent=35 // pred_fallthru
          _
      $region36: #{tpu_custom_call.1} parent=5 // pred_fallthru
        _
      %p259 = scmp.le.s32.totalorder 1, %s20
      %p260 = scmp.lt.s32.totalorder %s20, 3
      %p261 = pnand %p259, %p260
      %p262 = pneg %p261
      // Predicated region
      $region41: #{tpu_custom_call.1} parent=5 // pred_check
        _
      $region42: #{tpu_custom_call.1} parent=5 // pred_check_branch
        %264 = sbr.rel (%p261) target = $region44
      $region43: #{tpu_custom_call.1} parent=5 // pred_region
        %s265 = ssub.s32 %s20, 1
        %s266 = sand.u32 %s33, 1
        %s267 = scalar_lea.sflag [#allocation3], %s266
        %s268 = sand.u32 %s33, 1
        %s269 = smul.addr %s268, 8
        %s270 = scalar_lea.vmem [#allocation2], %s269
        // Predicated region
        $region45: #{tpu_custom_call.1} parent=43 // pred_check
          %p271 = pneg %p46
        $region46: #{tpu_custom_call.1} parent=43 // pred_check_branch
          %273 = sbr.rel (%p271) target = $region48
        $region47: #{tpu_custom_call.1} parent=43 // pred_region
          %274 = dma.done %s267, 128
        $region48: #{tpu_custom_call.1} parent=43 // pred_fallthru
          _
        // Predicated region
        $region49: #{tpu_custom_call.1} parent=43 // pred_check
          %p275 = pneg %p67
        $region50: #{tpu_custom_call.1} parent=43 // pred_check_branch
          %277 = sbr.rel (%p275) target = $region52
        $region51: #{tpu_custom_call.1} parent=43 // pred_region
          %278 = dma.done [#allocation6], 2048
        $region52: #{tpu_custom_call.1} parent=43 // pred_fallthru
          _
        // Predicated region
        $region53: #{tpu_custom_call.1} parent=43 // pred_check
          %p279 = pneg %p109
        $region54: #{tpu_custom_call.1} parent=43 // pred_check_branch
          %281 = sbr.rel (%p279) target = $region56
        $region55: #{tpu_custom_call.1} parent=43 // pred_region
          %282 = dma.done [#allocation6], 2048
        $region56: #{tpu_custom_call.1} parent=43 // pred_fallthru
          _
        // Predicated region
        $region57: #{tpu_custom_call.1} parent=43 // pred_check
          %p283 = pneg %p151
        $region58: #{tpu_custom_call.1} parent=43 // pred_check_branch
          %285 = sbr.rel (%p283) target = $region60
        $region59: #{tpu_custom_call.1} parent=43 // pred_region
          %286 = dma.done [#allocation9], 2048
        $region60: #{tpu_custom_call.1} parent=43 // pred_fallthru
          _
        %s287 = sand.u32 %s33, 1
        %s288 = scalar_lea.sflag [#allocation3], %s287
        %s289 = sand.u32 %s33, 1
        %s290 = smul.addr %s289, 8
        %s291 = scalar_lea.vmem [#allocation2], %s290
        %p292 = pneg %p46
        %p293 = pneg %p43
        %p294 = pneg %p67
        %p295 = pneg %p64
        %p296 = pneg %p88
        %p297 = pneg %p85
        %p298 = pneg %p109
        %p299 = pneg %p106
        %p300 = pneg %p130
        %p301 = pneg %p127
        %p302 = pneg %p151
        %p303 = pneg %p148
        %p304 = pneg %p177
        %p305 = pneg %p174
        %s306 = sand.u32 %s164, 1
        %s307 = scalar_lea.sflag [#allocation4], %s306
        %s308 = sand.u32 %s164, 1
        %s309 = smul.addr %s308, 8
        %s310 = scalar_lea.vmem [#allocation10], %s309
        %v311 = vld [vmem:[%s270] sm:$0xff]
        %v312 = vld [vmem:[#allocation8] sm:$0xff]
        %v313 = vld [vmem:[#allocation8 + $0x8] sm:$0xff]
        %v314 = vld [vmem:[#allocation8 + $0x10] sm:$0xff]
        %v315 = vld [vmem:[#allocation8 + $0x18] sm:$0xff]
        %v316 = vld [vmem:[#allocation8 + $0x20] sm:$0xff]
        %v317 = vld [vmem:[#allocation8 + $0x28] sm:$0xff]
        %v318 = vld [vmem:[#allocation8 + $0x30] sm:$0xff]
        %v319 = vld [vmem:[#allocation8 + $0x38] sm:$0xff]
        %v320 = vld [vmem:[#allocation8 + $0x40] sm:$0xff]
        %v321 = vld [vmem:[#allocation8 + $0x48] sm:$0xff]
        %v322 = vld [vmem:[#allocation8 + $0x50] sm:$0xff]
        %v323 = vld [vmem:[#allocation8 + $0x58] sm:$0xff]
        %v324 = vld [vmem:[#allocation8 + $0x60] sm:$0xff]
        %v325 = vld [vmem:[#allocation8 + $0x68] sm:$0xff]
        %v326 = vld [vmem:[#allocation8 + $0x70] sm:$0xff]
        %v327 = vld [vmem:[#allocation8 + $0x78] sm:$0xff]
        %v328 = vld [vmem:[#allocation5] sm:$0xff]
        %v329 = vld [vmem:[#allocation5 + $0x8] sm:$0xff]
        %v330 = vld [vmem:[#allocation5 + $0x10] sm:$0xff]
        %v331 = vld [vmem:[#allocation5 + $0x18] sm:$0xff]
        %v332 = vld [vmem:[#allocation5 + $0x20] sm:$0xff]
        %v333 = vld [vmem:[#allocation5 + $0x28] sm:$0xff]
        %v334 = vld [vmem:[#allocation5 + $0x30] sm:$0xff]
        %v335 = vld [vmem:[#allocation5 + $0x38] sm:$0xff]
        %v336 = vld [vmem:[#allocation5 + $0x40] sm:$0xff]
        %v337 = vld [vmem:[#allocation5 + $0x48] sm:$0xff]
        %v338 = vld [vmem:[#allocation5 + $0x50] sm:$0xff]
        %v339 = vld [vmem:[#allocation5 + $0x58] sm:$0xff]
        %v340 = vld [vmem:[#allocation5 + $0x60] sm:$0xff]
        %v341 = vld [vmem:[#allocation5 + $0x68] sm:$0xff]
        %v342 = vld [vmem:[#allocation5 + $0x70] sm:$0xff]
        %v343 = vld [vmem:[#allocation5 + $0x78] sm:$0xff]
        %v344 = vld [vmem:[%s2] sm:$0x1]
        %v345 = vld [vmem:[#allocation7] sm:$0xff]
        %v346 = vld [vmem:[#allocation7 + $0x8] sm:$0xff]
        %v347 = vld [vmem:[#allocation7 + $0x10] sm:$0xff]
        %v348 = vld [vmem:[#allocation7 + $0x18] sm:$0xff]
        %v349 = vld [vmem:[#allocation7 + $0x20] sm:$0xff]
        %v350 = vld [vmem:[#allocation7 + $0x28] sm:$0xff]
        %v351 = vld [vmem:[#allocation7 + $0x30] sm:$0xff]
        %v352 = vld [vmem:[#allocation7 + $0x38] sm:$0xff]
        %v353 = vld [vmem:[#allocation7 + $0x40] sm:$0xff]
        %v354 = vld [vmem:[#allocation7 + $0x48] sm:$0xff]
        %v355 = vld [vmem:[#allocation7 + $0x50] sm:$0xff]
        %v356 = vld [vmem:[#allocation7 + $0x58] sm:$0xff]
        %v357 = vld [vmem:[#allocation7 + $0x60] sm:$0xff]
        %v358 = vld [vmem:[#allocation7 + $0x68] sm:$0xff]
        %v359 = vld [vmem:[#allocation7 + $0x70] sm:$0xff]
        %v360 = vld [vmem:[#allocation7 + $0x78] sm:$0xff]
        %v361 = vld [vmem:[%s4] sm:$0x1]
        %v362 = vmax.f32 %v311, 0.0
        %v364 = vlaneseq
        %v365 = vshrl.u32 %v364, 7
        %v366 = vsub.s32 0, %v365
        %v367 = vrot.slane %v344, %v366
        %369 = vmatprep.subr.mxu0 0.0
        %370 = vmatpush1.msra.mxu0 %v328
        %371 = vmatprep.subr.mxu0 0.0
        %372 = vmatpush1.msra.mxu0 %v329
        %373 = vmatprep.subr.mxu0 0.0
        %374 = vmatpush1.msra.mxu0 %v330
        %375 = vmatprep.subr.mxu0 0.0
        %376 = vmatpush1.msra.mxu0 %v331
        %377 = vmatprep.subr.mxu0 0.0
        %378 = vmatpush1.msra.mxu0 %v332
        %379 = vmatprep.subr.mxu0 0.0
        %380 = vmatpush1.msra.mxu0 %v333
        %381 = vmatprep.subr.mxu0 0.0
        %382 = vmatpush1.msra.mxu0 %v334
        %383 = vmatprep.subr.mxu0 0.0
        %384 = vmatpush1.msra.mxu0 %v335
        %385 = vmatprep.subr.mxu0 0.0
        %386 = vmatpush1.msra.mxu0 %v336
        %387 = vmatprep.subr.mxu0 0.0
        %388 = vmatpush1.msra.mxu0 %v337
        %389 = vmatprep.subr.mxu0 0.0
        %390 = vmatpush1.msra.mxu0 %v338
        %391 = vmatprep.subr.mxu0 0.0
        %392 = vmatpush1.msra.mxu0 %v339
        %393 = vmatprep.subr.mxu0 0.0
        %394 = vmatpush1.msra.mxu0 %v340
        %395 = vmatprep.subr.mxu0 0.0
        %396 = vmatpush1.msra.mxu0 %v341
        %397 = vmatprep.subr.mxu0 0.0
        %398 = vmatpush1.msra.mxu0 %v342
        %399 = vmatprep.subr.mxu0 0.0
        %400 = vmatpush1.msra.mxu0 %v343
        %401 = vmatprep.subr.mxu0 0.0
        %402 = vmatpush1.msra.mxu0 0.0
        %403 = vmatprep.subr.mxu0 0.0
        %404 = vmatpush1.msra.mxu0 0.0
        %405 = vmatprep.subr.mxu0 0.0
        %406 = vmatpush1.msra.mxu0 0.0
        %407 = vmatprep.subr.mxu0 0.0
        %408 = vmatpush1.msra.mxu0 0.0
        %409 = vmatprep.subr.mxu0 0.0
        %410 = vmatpush1.msra.mxu0 0.0
        %411 = vmatprep.subr.mxu0 0.0
        %412 = vmatpush1.msra.mxu0 0.0
        %413 = vmatprep.subr.mxu0 0.0
        %414 = vmatpush1.msra.mxu0 0.0
        %415 = vmatprep.subr.mxu0 0.0
        %416 = vmatpush1.msra.mxu0 0.0
        %417 = vmatprep.subr.mxu0 0.0
        %418 = vmatpush1.msra.mxu0 0.0
        %419 = vmatprep.subr.mxu0 0.0
        %420 = vmatpush1.msra.mxu0 0.0
        %421 = vmatprep.subr.mxu0 0.0
        %422 = vmatpush1.msra.mxu0 0.0
        %423 = vmatprep.subr.mxu0 0.0
        %424 = vmatpush1.msra.mxu0 0.0
        %425 = vmatprep.subr.mxu0 0.0
        %426 = vmatpush1.msra.mxu0 0.0
        %427 = vmatprep.subr.mxu0 0.0
        %428 = vmatpush1.msra.mxu0 0.0
        %429 = vmatprep.subr.mxu0 0.0
        %430 = vmatpush1.msra.mxu0 0.0
        %431 = vmatprep.subr.mxu0 0.0
        %432 = vmatpush1.msra.mxu0 0.0
        %433 = vmatprep.mubr.f32.mxu0 0.0
        %434 = vmatmul.mubr.f32.gmra.mrb[0].mxu0 %v362
        %v435 = vpop.f32.mrb[0].mxu0
        %v436 = vadd.f32 %v367, %v435
        %v437 = vpop.f32.mrb[0].mxu0
        %438 = vdwg.mxu0
        %v439 = vmax.f32 %v436, 0.0
        %v441 = vlaneseq
        %v442 = vshrl.u32 %v441, 7
        %v443 = vsub.s32 0, %v442
        %v444 = vrot.slane %v361, %v443
        %446 = vmatprep.subr.mxu0 0.0
        %447 = vmatpush1.msra.mxu0 %v345
        %448 = vmatprep.subr.mxu0 0.0
        %449 = vmatpush1.msra.mxu0 %v346
        %450 = vmatprep.subr.mxu0 0.0
        %451 = vmatpush1.msra.mxu0 %v347
        %452 = vmatprep.subr.mxu0 0.0
        %453 = vmatpush1.msra.mxu0 %v348
        %454 = vmatprep.subr.mxu0 0.0
        %455 = vmatpush1.msra.mxu0 %v349
        %456 = vmatprep.subr.mxu0 0.0
        %457 = vmatpush1.msra.mxu0 %v350
        %458 = vmatprep.subr.mxu0 0.0
        %459 = vmatpush1.msra.mxu0 %v351
        %460 = vmatprep.subr.mxu0 0.0
        %461 = vmatpush1.msra.mxu0 %v352
        %462 = vmatprep.subr.mxu0 0.0
        %463 = vmatpush1.msra.mxu0 %v353
        %464 = vmatprep.subr.mxu0 0.0
        %465 = vmatpush1.msra.mxu0 %v354
        %466 = vmatprep.subr.mxu0 0.0
        %467 = vmatpush1.msra.mxu0 %v355
        %468 = vmatprep.subr.mxu0 0.0
        %469 = vmatpush1.msra.mxu0 %v356
        %470 = vmatprep.subr.mxu0 0.0
        %471 = vmatpush1.msra.mxu0 %v357
        %472 = vmatprep.subr.mxu0 0.0
        %473 = vmatpush1.msra.mxu0 %v358
        %474 = vmatprep.subr.mxu0 0.0
        %475 = vmatpush1.msra.mxu0 %v359
        %476 = vmatprep.subr.mxu0 0.0
        %477 = vmatpush1.msra.mxu0 %v360
        %478 = vmatprep.subr.mxu0 0.0
        %479 = vmatpush1.msra.mxu0 0.0
        %480 = vmatprep.subr.mxu0 0.0
        %481 = vmatpush1.msra.mxu0 0.0
        %482 = vmatprep.subr.mxu0 0.0
        %483 = vmatpush1.msra.mxu0 0.0
        %484 = vmatprep.subr.mxu0 0.0
        %485 = vmatpush1.msra.mxu0 0.0
        %486 = vmatprep.subr.mxu0 0.0
        %487 = vmatpush1.msra.mxu0 0.0
        %488 = vmatprep.subr.mxu0 0.0
        %489 = vmatpush1.msra.mxu0 0.0
        %490 = vmatprep.subr.mxu0 0.0
        %491 = vmatpush1.msra.mxu0 0.0
        %492 = vmatprep.subr.mxu0 0.0
        %493 = vmatpush1.msra.mxu0 0.0
        %494 = vmatprep.subr.mxu0 0.0
        %495 = vmatpush1.msra.mxu0 0.0
        %496 = vmatprep.subr.mxu0 0.0
        %497 = vmatpush1.msra.mxu0 0.0
        %498 = vmatprep.subr.mxu0 0.0
        %499 = vmatpush1.msra.mxu0 0.0
        %500 = vmatprep.subr.mxu0 0.0
        %501 = vmatpush1.msra.mxu0 0.0
        %502 = vmatprep.subr.mxu0 0.0
        %503 = vmatpush1.msra.mxu0 0.0
        %504 = vmatprep.subr.mxu0 0.0
        %505 = vmatpush1.msra.mxu0 0.0
        %506 = vmatprep.subr.mxu0 0.0
        %507 = vmatpush1.msra.mxu0 0.0
        %508 = vmatprep.subr.mxu0 0.0
        %509 = vmatpush1.msra.mxu0 0.0
        %510 = vmatprep.mubr.f32.mxu0 0.0
        %511 = vmatmul.mubr.f32.gmra.mrb[0].mxu0 %v439
        %v512 = vpop.f32.mrb[0].mxu0
        %v513 = vadd.f32 %v444, %v512
        %v514 = vpop.f32.mrb[0].mxu0
        %515 = vdwg.mxu0
        %516 = vmatprep.subr.mxu0 0.0
        %517 = vmatpush1.msra.mxu0 %v312
        %518 = vmatprep.subr.mxu0 0.0
        %519 = vmatpush1.msra.mxu0 %v313
        %520 = vmatprep.subr.mxu0 0.0
        %521 = vmatpush1.msra.mxu0 %v314
        %522 = vmatprep.subr.mxu0 0.0
        %523 = vmatpush1.msra.mxu0 %v315
        %524 = vmatprep.subr.mxu0 0.0
        %525 = vmatpush1.msra.mxu0 %v316
        %526 = vmatprep.subr.mxu0 0.0
        %527 = vmatpush1.msra.mxu0 %v317
        %528 = vmatprep.subr.mxu0 0.0
        %529 = vmatpush1.msra.mxu0 %v318
        %530 = vmatprep.subr.mxu0 0.0
        %531 = vmatpush1.msra.mxu0 %v319
        %532 = vmatprep.subr.mxu0 0.0
        %533 = vmatpush1.msra.mxu0 %v320
        %534 = vmatprep.subr.mxu0 0.0
        %535 = vmatpush1.msra.mxu0 %v321
        %536 = vmatprep.subr.mxu0 0.0
        %537 = vmatpush1.msra.mxu0 %v322
        %538 = vmatprep.subr.mxu0 0.0
        %539 = vmatpush1.msra.mxu0 %v323
        %540 = vmatprep.subr.mxu0 0.0
        %541 = vmatpush1.msra.mxu0 %v324
        %542 = vmatprep.subr.mxu0 0.0
        %543 = vmatpush1.msra.mxu0 %v325
        %544 = vmatprep.subr.mxu0 0.0
        %545 = vmatpush1.msra.mxu0 %v326
        %546 = vmatprep.subr.mxu0 0.0
        %547 = vmatpush1.msra.mxu0 %v327
        %548 = vmatprep.subr.mxu0 0.0
        %549 = vmatpush1.msra.mxu0 0.0
        %550 = vmatprep.subr.mxu0 0.0
        %551 = vmatpush1.msra.mxu0 0.0
        %552 = vmatprep.subr.mxu0 0.0
        %553 = vmatpush1.msra.mxu0 0.0
        %554 = vmatprep.subr.mxu0 0.0
        %555 = vmatpush1.msra.mxu0 0.0
        %556 = vmatprep.subr.mxu0 0.0
        %557 = vmatpush1.msra.mxu0 0.0
        %558 = vmatprep.subr.mxu0 0.0
        %559 = vmatpush1.msra.mxu0 0.0
        %560 = vmatprep.subr.mxu0 0.0
        %561 = vmatpush1.msra.mxu0 0.0
        %562 = vmatprep.subr.mxu0 0.0
        %563 = vmatpush1.msra.mxu0 0.0
        %564 = vmatprep.subr.mxu0 0.0
        %565 = vmatpush1.msra.mxu0 0.0
        %566 = vmatprep.subr.mxu0 0.0
        %567 = vmatpush1.msra.mxu0 0.0
        %568 = vmatprep.subr.mxu0 0.0
        %569 = vmatpush1.msra.mxu0 0.0
        %570 = vmatprep.subr.mxu0 0.0
        %571 = vmatpush1.msra.mxu0 0.0
        %572 = vmatprep.subr.mxu0 0.0
        %573 = vmatpush1.msra.mxu0 0.0
        %574 = vmatprep.subr.mxu0 0.0
        %575 = vmatpush1.msra.mxu0 0.0
        %576 = vmatprep.subr.mxu0 0.0
        %577 = vmatpush1.msra.mxu0 0.0
        %578 = vmatprep.subr.mxu0 0.0
        %579 = vmatpush1.msra.mxu0 0.0
        %580 = vmatprep.mubr.f32.mxu0 0.0
        %581 = vmatmul.mubr.f32.gmra.mrb[0].mxu0 %v311
        %v582 = vpop.f32.mrb[0].mxu0
        %v583 = vadd.f32 %v513, %v582
        %v584 = vpop.f32.mrb[0].mxu0
        %585 = vdwg.mxu0
        %vm586 = vcmp.ge.f32.partialorder %v583, 0.0
        %v587 = vmul.f32 %v583, 0.2
        %v588 = vsel %vm586, %v583, %v587
        %589 = vst [vmem:[%s310] sm:$0xff] %v588
        %s590 = sand.u32 %s164, 1
        %s591 = scalar_lea.sflag [#allocation4], %s590
        %s592 = sand.u32 %s164, 1
        %s593 = smul.addr %s592, 8
        %s594 = scalar_lea.vmem [#allocation10], %s593
        // Predicated region
        $region61: #{tpu_custom_call.1} parent=43 // pred_check
          %p595 = pneg %p174
        $region62: #{tpu_custom_call.1} parent=43 // pred_check_branch
          %597 = sbr.rel (%p595) target = $region64
        $region63: #{tpu_custom_call.1} parent=43 // pred_region
          %s599 = ssub.s32 128, 128
          %600 = vsyncadd %s591, %s599
          %s601 = smul.addr %s25, 128
          %s602 = scalar_lea.hbm %s6, %s601
          %s604 = sshll.u32 %s594, 4
          %s605 = int_to_ptr.vmem [resolvable:$true] %s604
          %607 = dma.vmem_to_hbm [thread:$0]  %s605, 128, %s602, %s591
        $region64: #{tpu_custom_call.1} parent=43 // pred_fallthru
          _
      $region44: #{tpu_custom_call.1} parent=5 // pred_fallthru
        _
      %p608 = scmp.le.s32.totalorder 2, %s20
      // Predicated region
      $region65: #{tpu_custom_call.1} parent=5 // pred_check
        %p609 = pneg %p608
      $region66: #{tpu_custom_call.1} parent=5 // pred_check_branch
        %611 = sbr.rel (%p609) target = $region68
      $region67: #{tpu_custom_call.1} parent=5 // pred_region
        %s612 = ssub.s32 %s20, 2
        // Predicated region
        $region69: #{tpu_custom_call.1} parent=67 // pred_check
          %p613 = pneg %p180
        $region70: #{tpu_custom_call.1} parent=67 // pred_check_branch
          %615 = sbr.rel (%p613) target = $region72
        $region71: #{tpu_custom_call.1} parent=67 // pred_region
          %s616 = sand.u32 %s165, 1
          %s617 = scalar_lea.sflag [#allocation4], %s616
          %s618 = sand.u32 %s165, 1
          %s619 = smul.addr %s618, 8
          %s620 = scalar_lea.vmem [#allocation10], %s619
          %621 = dma.done %s617, 128
        $region72: #{tpu_custom_call.1} parent=67 // pred_fallthru
          _
      $region68: #{tpu_custom_call.1} parent=5 // pred_fallthru
        _
    $region6: #{tpu_custom_call.1} parent=1 // loop_footer
      %s24 = sadd.s32 1, %s20
    $region7: #{tpu_custom_call.1} parent=1 // loop_footer_branch
      %19 = sbr.rel target = $region3
    $region8: #{tpu_custom_call.1} parent=1 // loop_exit
      _
    %622 = vsyncpa [#allocation3], 1
    %s623 = scalar_lea.sflag [#allocation3], 1
    %624 = vsyncpa %s623, 1
    %625 = vsyncpa [#allocation6], 1
    %626 = vsyncpa [#allocation9], 1
    %627 = vsyncpa [#allocation4], 1
    %s628 = scalar_lea.sflag [#allocation4], 1
    %629 = vsyncpa %s628, 1

</llo_original>
